<compile_context>
chip_gen: v7x
topology: tpu7x:2x2x1
jax: 0.10.0
libtpu: 0.0.40
codegen_flags: <defaults>
</compile_context>

<pallas_src>
import functools

import jax
import jax.numpy as jnp
from jax.experimental import pallas as pl
from jax.experimental.pallas import tpu as pltpu


def _round_up(n, m):
    return ((n + m - 1) // m) * m


def _mlp_kernel(x_ref, w1_ref, b1_ref, w2_ref, b2_ref, w3_ref, b3_ref, o_ref):
    # Layer 1: in-kernel bf16 cast of the f32 x tile (VPU work, hidden behind the
    # MXU), bf16 MXU matmul with f32 accumulation, f32 bias + ReLU.
    x = x_ref[...].astype(jnp.bfloat16)
    h1 = jnp.dot(x, w1_ref[...], preferred_element_type=jnp.float32)
    h1 = jnp.maximum(h1 + b1_ref[...], 0.0)
    # (Dropout -> identity in eval mode)

    # Layer 2: Linear + bias + ReLU (re-feed MXU in bf16).
    h2 = jnp.dot(h1.astype(jnp.bfloat16), w2_ref[...],
                 preferred_element_type=jnp.float32)
    h2 = jnp.maximum(h2 + b2_ref[...], 0.0)
    # (Dropout -> identity in eval mode)

    # Layer 3: logits, lane-padded to 128 (real logits in the first 3 lanes).
    # Stored as bf16 to halve the HBM writeback.
    out = jnp.dot(h2.astype(jnp.bfloat16), w3_ref[...],
                  preferred_element_type=jnp.float32)
    o_ref[...] = (out + b3_ref[...]).astype(o_ref.dtype)


def _default_vmem_limit_bytes(tb, D, H1, H2, C_pad):
    """Rough VMEM footprint (double-buffered streams + resident weights) + headroom."""
    x_bytes = 2 * tb * D * 4                                # f32 x tile, 2 buffers
    o_bytes = 2 * tb * C_pad * 2                            # bf16 out tile, 2 buffers
    w_bytes = 2 * 2 * (D * H1 + H1 * H2 + H2 * C_pad)       # bf16 weights, 2 buffers
    b_bytes = 2 * 4 * (H1 + H2 + C_pad)                     # f32 biases, 2 buffers
    inter_bytes = tb * (H1 + H2 + C_pad) * 4                # f32 h1/h2/out live values
    total = x_bytes + o_bytes + w_bytes + b_bytes + inter_bytes
    # 2x headroom for compiler scratch; 32 MiB floor (cheap everywhere), 64 MiB cap
    # so the request stays within v7x physical VMEM.  Larger input_dim regimes
    # should switch to K-streaming (see TODO above) rather than raising this.
    return int(min(max(2 * total, 32 * 1024 * 1024), 64 * 1024 * 1024))


@functools.partial(jax.jit, static_argnames=("block_b", "vmem_limit_bytes"))
def pair_classifier_forward(x, w1, b1, w2, b2, w3, b3, *,
                            block_b=1024, vmem_limit_bytes=None):
    """Fused forward pass of PairClassifier (eval mode).

    x:  (B, input_dim) float32
    w1: (input_dim, 512), b1: (1, 512)
    w2: (512, 256),       b2: (1, 256)
    w3: (256, 3),         b3: (1, 3)
    returns: (B, 3) float32 logits
    """
    B, D = x.shape
    H1 = w1.shape[1]
    H2 = w2.shape[1]
    C = w3.shape[1]

    # Lane-dense padding of the layer-3 output dim only (3 -> 128) so the final
    # store is an unmasked vst; zero-padded w3/b3 columns leave the real logits
    # unchanged.  x / w1 are NOT padded: a full-K block is legal for any D and the
    # MXU handles the ragged contraction internally.
    C_pad = max(128, _round_up(C, 128))

    bf16 = jnp.bfloat16
    w1_p = w1.astype(bf16)
    w2_p = w2.astype(bf16)
    w3_p = jnp.pad(w3, ((0, 0), (0, C_pad - C))).astype(bf16)
    b1_p = b1.astype(jnp.float32)
    b2_p = b2.astype(jnp.float32)
    b3_p = jnp.pad(b3, ((0, 0), (0, C_pad - C))).astype(jnp.float32)

    # Batch tile: large enough to amortize per-grid-step overhead, small enough to
    # (a) keep >= 2 grid steps so both v7x TensorCores are used and (b) fit VMEM.
    tb = min(block_b, B)
    if B > 8:
        tb = min(tb, _round_up(pl.cdiv(B, 2), 8))
    grid = (pl.cdiv(B, tb),)

    if vmem_limit_bytes is None:
        vmem_limit_bytes = _default_vmem_limit_bytes(tb, D, H1, H2, C_pad)

    compiler_params = pltpu.CompilerParams(
        dimension_semantics=("parallel",),
        vmem_limit_bytes=vmem_limit_bytes,
    )

    out_padded = pl.pallas_call(
        _mlp_kernel,
        out_shape=jax.ShapeDtypeStruct((B, C_pad), bf16),
        grid_spec=pltpu.PrefetchScalarGridSpec(
            num_scalar_prefetch=0,
            grid=grid,
            in_specs=[
                pl.BlockSpec((tb, D), lambda i: (i, 0)),     # x: f32, tiled over batch
                pl.BlockSpec((D, H1), lambda i: (0, 0)),     # resident weights/biases
                pl.BlockSpec((1, H1), lambda i: (0, 0)),
                pl.BlockSpec((H1, H2), lambda i: (0, 0)),
                pl.BlockSpec((1, H2), lambda i: (0, 0)),
                pl.BlockSpec((H2, C_pad), lambda i: (0, 0)),
                pl.BlockSpec((1, C_pad), lambda i: (0, 0)),
            ],
            out_specs=pl.BlockSpec((tb, C_pad), lambda i: (i, 0)),
        ),
        compiler_params=compiler_params,
    )(x, w1_p, b1_p, w2_p, b2_p, w3_p, b3_p)

    # Drop the lane padding; real logits live in the first C columns (cheap: B x C).
    return out_padded[:, :C].astype(jnp.float32)


def init_params(key, input_dim):
    """Deterministic parameter init (shapes match the nn.Linear layers, W stored as W.T)."""
    k1, k2, k3, k4, k5, k6 = jax.random.split(key, 6)

    def linear_init(kw, kb, fan_in, fan_out):
        # PyTorch-style uniform(-1/sqrt(fan_in), 1/sqrt(fan_in))
        bound = 1.0 / jnp.sqrt(fan_in)
        w = jax.random.uniform(kw, (fan_in, fan_out), jnp.float32, -bound, bound)
        b = jax.random.uniform(kb, (1, fan_out), jnp.float32, -bound, bound)
        return w, b

    w1, b1 = linear_init(k1, k2, input_dim, 512)
    w2, b2 = linear_init(k3, k4, 512, 256)
    w3, b3 = linear_init(k5, k6, 256, 3)
    return w1, b1, w2, b2, w3, b3


def reference_forward_f32(x, w1, b1, w2, b2, w3, b3):
    h1 = jnp.maximum(x @ w1 + b1, 0.0)
    h2 = jnp.maximum(h1 @ w2 + b2, 0.0)
    return h2 @ w3 + b3


def reference_forward_bf16(x, w1, b1, w2, b2, w3, b3):
    # Mirrors the kernel's numerics: bf16 MXU inputs, f32 accumulation/biases,
    # bf16 output rounding.
    bf16 = jnp.bfloat16
    h1 = jnp.dot(x.astype(bf16), w1.astype(bf16),
                 preferred_element_type=jnp.float32) + b1
    h1 = jnp.maximum(h1, 0.0)
    h2 = jnp.dot(h1.astype(bf16), w2.astype(bf16),
                 preferred_element_type=jnp.float32) + b2
    h2 = jnp.maximum(h2, 0.0)
    out = jnp.dot(h2.astype(bf16), w3.astype(bf16),
                  preferred_element_type=jnp.float32) + b3
    return out.astype(bf16).astype(jnp.float32)


if __name__ == "__main__":
    key = jax.random.PRNGKey(0)
    kx, kp = jax.random.split(key)

    # Small deterministic test shapes: batch=20 exercises the 2-step grid path
    # (tb=16) including a partial final block; input_dim=32 is a full-K (unpadded)
    # contraction.
    batch, input_dim = 20, 32
    x = jax.random.normal(kx, (batch, input_dim), dtype=jnp.float32)
    params = init_params(kp, input_dim)

    out = pair_classifier_forward(x, *params)
    out = jax.block_until_ready(out)

    ref_bf16 = reference_forward_bf16(x, *params)
    ref_f32 = reference_forward_f32(x, *params)

    assert out.shape == (batch, 3)
    # Tight check vs. a bf16-MXU reference, loose sanity check vs. full-f32 math.
    assert jnp.allclose(out, ref_bf16, atol=2e-2, rtol=2e-2), (
        f"max err vs bf16 ref: {jnp.max(jnp.abs(out - ref_bf16))}")
    assert jnp.allclose(out, ref_f32, atol=1e-1, rtol=1e-1), (
        f"max err vs f32 ref: {jnp.max(jnp.abs(out - ref_f32))}")

    print("KERNEL_OK")
</pallas_src>

<mosaic_0001>
module attributes {stable_mosaic.version = 11 : i64} {
  func.func @_mlp_kernel(%arg0: i32, %arg1: memref<16x32xf32, #tpu.memory_space<vmem>>, %arg2: memref<32x512xbf16, #tpu.memory_space<vmem>>, %arg3: memref<1x512xf32, #tpu.memory_space<vmem>>, %arg4: memref<512x256xbf16, #tpu.memory_space<vmem>>, %arg5: memref<1x256xf32, #tpu.memory_space<vmem>>, %arg6: memref<256x128xbf16, #tpu.memory_space<vmem>>, %arg7: memref<1x128xf32, #tpu.memory_space<vmem>>, %arg8: memref<16x128xbf16, #tpu.memory_space<vmem>>) attributes {dimension_semantics = [#tpu.dimension_semantics<parallel>], iteration_bounds = array<i64: 2>, scalar_prefetch = 0 : i64, scratch_operands = 0 : i64, tpu.core_type = #tpu.core_type<tc>, window_params = [{transform_indices = @transform_0, window_bounds = array<i64: 16, 32>}, {pipeline_mode = #tpu.pipeline_mode<synchronous>, transform_indices = @transform_1, window_bounds = array<i64: 32, 512>}, {pipeline_mode = #tpu.pipeline_mode<synchronous>, transform_indices = @transform_2, window_bounds = array<i64: 1, 512>}, {pipeline_mode = #tpu.pipeline_mode<synchronous>, transform_indices = @transform_3, window_bounds = array<i64: 512, 256>}, {pipeline_mode = #tpu.pipeline_mode<synchronous>, transform_indices = @transform_4, window_bounds = array<i64: 1, 256>}, {pipeline_mode = #tpu.pipeline_mode<synchronous>, transform_indices = @transform_5, window_bounds = array<i64: 256, 128>}, {pipeline_mode = #tpu.pipeline_mode<synchronous>, transform_indices = @transform_6, window_bounds = array<i64: 1, 128>}, {transform_indices = @transform_7, window_bounds = array<i64: 16, 128>}]} {
    %c0 = arith.constant 0 : index
    %c0_0 = arith.constant 0 : index
    %0 = vector.load %arg1[%c0, %c0_0] : memref<16x32xf32, #tpu.memory_space<vmem>>, vector<16x32xf32>
    %1 = arith.truncf %0 : vector<16x32xf32> to vector<16x32xbf16>
    %c0_1 = arith.constant 0 : index
    %c0_2 = arith.constant 0 : index
    %2 = vector.load %arg2[%c0_1, %c0_2] : memref<32x512xbf16, #tpu.memory_space<vmem>>, vector<32x512xbf16>
    %cst = arith.constant dense<0.000000e+00> : vector<16x512xf32>
    %3 = tpu.matmul %1, %2, %cst {dimension_numbers = #tpu.dot_dimension_numbers<[1], [0], [0], [1], [0, 0, 1, 1], [], []>} : vector<16x32xbf16>, vector<32x512xbf16>, vector<16x512xf32> -> vector<16x512xf32>
    %c0_3 = arith.constant 0 : index
    %c0_4 = arith.constant 0 : index
    %4 = vector.load %arg3[%c0_3, %c0_4] : memref<1x512xf32, #tpu.memory_space<vmem>>, vector<1x512xf32>
    %5 = vector.broadcast %4 : vector<1x512xf32> to vector<16x512xf32>
    %6 = arith.addf %3, %5 : vector<16x512xf32>
    %cst_5 = arith.constant 0.000000e+00 : f32
    %7 = vector.broadcast %cst_5 : f32 to vector<16x512xf32>
    %8 = arith.maximumf %6, %7 : vector<16x512xf32>
    %9 = arith.truncf %8 : vector<16x512xf32> to vector<16x512xbf16>
    %c0_6 = arith.constant 0 : index
    %c0_7 = arith.constant 0 : index
    %10 = vector.load %arg4[%c0_6, %c0_7] : memref<512x256xbf16, #tpu.memory_space<vmem>>, vector<512x256xbf16>
    %cst_8 = arith.constant dense<0.000000e+00> : vector<16x256xf32>
    %11 = tpu.matmul %9, %10, %cst_8 {dimension_numbers = #tpu.dot_dimension_numbers<[1], [0], [0], [1], [0, 0, 1, 1], [], []>} : vector<16x512xbf16>, vector<512x256xbf16>, vector<16x256xf32> -> vector<16x256xf32>
    %c0_9 = arith.constant 0 : index
    %c0_10 = arith.constant 0 : index
    %12 = vector.load %arg5[%c0_9, %c0_10] : memref<1x256xf32, #tpu.memory_space<vmem>>, vector<1x256xf32>
    %13 = vector.broadcast %12 : vector<1x256xf32> to vector<16x256xf32>
    %14 = arith.addf %11, %13 : vector<16x256xf32>
    %cst_11 = arith.constant 0.000000e+00 : f32
    %15 = vector.broadcast %cst_11 : f32 to vector<16x256xf32>
    %16 = arith.maximumf %14, %15 : vector<16x256xf32>
    %17 = arith.truncf %16 : vector<16x256xf32> to vector<16x256xbf16>
    %c0_12 = arith.constant 0 : index
    %c0_13 = arith.constant 0 : index
    %18 = vector.load %arg6[%c0_12, %c0_13] : memref<256x128xbf16, #tpu.memory_space<vmem>>, vector<256x128xbf16>
    %cst_14 = arith.constant dense<0.000000e+00> : vector<16x128xf32>
    %19 = tpu.matmul %17, %18, %cst_14 {dimension_numbers = #tpu.dot_dimension_numbers<[1], [0], [0], [1], [0, 0, 1, 1], [], []>} : vector<16x256xbf16>, vector<256x128xbf16>, vector<16x128xf32> -> vector<16x128xf32>
    %c0_15 = arith.constant 0 : index
    %c0_16 = arith.constant 0 : index
    %20 = vector.load %arg7[%c0_15, %c0_16] : memref<1x128xf32, #tpu.memory_space<vmem>>, vector<1x128xf32>
    %21 = vector.broadcast %20 : vector<1x128xf32> to vector<16x128xf32>
    %22 = arith.addf %19, %21 : vector<16x128xf32>
    %23 = arith.truncf %22 : vector<16x128xf32> to vector<16x128xbf16>
    %c0_17 = arith.constant 0 : index
    %c0_18 = arith.constant 0 : index
    %24 = vector.load %arg8[%c0_17, %c0_18] : memref<16x128xbf16, #tpu.memory_space<vmem>>, vector<16x128xbf16>
    tpu.vector_store %arg8[%c0_17, %c0_18], %23 {strides = array<i32>} : memref<16x128xbf16, #tpu.memory_space<vmem>>, vector<16x128xbf16>,
    return
  }
  func.func @transform_0(%arg0: i32) -> (i32, i32) {
    %c0_i32 = arith.constant 0 : i32
    %c0_i32_0 = arith.constant 0 : i32
    return %arg0, %c0_i32 : i32, i32
  }
  func.func @transform_1(%arg0: i32) -> (i32, i32) {
    %c0_i32 = arith.constant 0 : i32
    %c0_i32_0 = arith.constant 0 : i32
    %c0_i32_1 = arith.constant 0 : i32
    return %c0_i32, %c0_i32_0 : i32, i32
  }
  func.func @transform_2(%arg0: i32) -> (i32, i32) {
    %c0_i32 = arith.constant 0 : i32
    %c0_i32_0 = arith.constant 0 : i32
    %c0_i32_1 = arith.constant 0 : i32
    return %c0_i32, %c0_i32_0 : i32, i32
  }
  func.func @transform_3(%arg0: i32) -> (i32, i32) {
    %c0_i32 = arith.constant 0 : i32
    %c0_i32_0 = arith.constant 0 : i32
    %c0_i32_1 = arith.constant 0 : i32
    return %c0_i32, %c0_i32_0 : i32, i32
  }
  func.func @transform_4(%arg0: i32) -> (i32, i32) {
    %c0_i32 = arith.constant 0 : i32
    %c0_i32_0 = arith.constant 0 : i32
    %c0_i32_1 = arith.constant 0 : i32
    return %c0_i32, %c0_i32_0 : i32, i32
  }
  func.func @transform_5(%arg0: i32) -> (i32, i32) {
    %c0_i32 = arith.constant 0 : i32
    %c0_i32_0 = arith.constant 0 : i32
    %c0_i32_1 = arith.constant 0 : i32
    return %c0_i32, %c0_i32_0 : i32, i32
  }
  func.func @transform_6(%arg0: i32) -> (i32, i32) {
    %c0_i32 = arith.constant 0 : i32
    %c0_i32_0 = arith.constant 0 : i32
    %c0_i32_1 = arith.constant 0 : i32
    return %c0_i32, %c0_i32_0 : i32, i32
  }
  func.func @transform_7(%arg0: i32) -> (i32, i32) {
    %c0_i32 = arith.constant 0 : i32
    %c0_i32_0 = arith.constant 0 : i32
    return %arg0, %c0_i32 : i32, i32
  }
}

</mosaic_0001>

<llo_original>
// kernel: pair_classifier_forward.1
$region0: #{pair_classifier_forward.1}
  #allocation0 [shape = 'u32[]', space=smem, size = 0x4, offset = 0x4, fixed_abs, tag = 'smem constant byte address 0x4 - core index']
  #allocation1 [shape = 'u32[144,128]{1,0:T(1,128)}', space=vmem, size = 0x12000, scoped, tag = 'internal scratch']
  %s0 = inlined_call_operand.vmem [shape: f32[20,32], index: 0, kind: input, shape index: {}]
  %s1 = inlined_call_operand.vmem [shape: bf16[32,512], index: 1, kind: input, shape index: {}]
  %s2 = inlined_call_operand.vmem [shape: f32[1,512], index: 2, kind: input, shape index: {}]
  %s3 = inlined_call_operand.vmem [shape: bf16[512,256], index: 3, kind: input, shape index: {}]
  %s4 = inlined_call_operand.vmem [shape: f32[1,256], index: 4, kind: input, shape index: {}]
  %s5 = inlined_call_operand.vmem [shape: bf16[256,128], index: 5, kind: input, shape index: {}]
  %s6 = inlined_call_operand.vmem [shape: f32[1,128], index: 6, kind: input, shape index: {}]
  %s7 = inlined_call_operand.vmem [shape: bf16[20,128], index: 7, kind: output, shape index: {}]
  %s8 = sld [smem:[#allocation0]]
  $region105: #{pair_classifier_forward.1} parent=0
    _
  %s10 = ssub.s32 1, %s8
  %s11 = scalar_select 0, %s10, %s8
  $region1: #{pair_classifier_forward.1} parent=0
    #allocation2 [shape = 'u8[8192]{0}', space=vmem, size = 0x2000, scoped, tag = 'output window, operand 0']
    loop: start=0, step=1, limit=4
    $region2: #{pair_classifier_forward.1} parent=1 // loop_pre_header
      _
    $region3: #{pair_classifier_forward.1} parent=1 // loop_header
      %s13 = sphi 0, %s17
      %p14 = scmp.ge.s32.totalorder %s13, 4
      %s23 = sphi 0, %s25
      %s26 = sphi 0, %s23
      %s27 = sphi 0, %s26
      %s43 = sphi 0, %s27
      %s47 = sphi 0, %s47
      %s49 = sphi 0, %s47
      %s50 = sphi 0, %s49
      %s64 = sphi 0, %s50
      %s68 = sphi 0, %s68
      %s70 = sphi 0, %s68
      %s71 = sphi 0, %s70
      %s85 = sphi 0, %s71
      %s89 = sphi 0, %s89
      %s91 = sphi 0, %s89
      %s92 = sphi 0, %s91
      %s106 = sphi 0, %s92
      %s110 = sphi 0, %s110
      %s112 = sphi 0, %s110
      %s113 = sphi 0, %s112
      %s127 = sphi 0, %s113
      %s131 = sphi 0, %s131
      %s133 = sphi 0, %s131
      %s134 = sphi 0, %s133
      %s148 = sphi 0, %s134
      %s152 = sphi 0, %s152
      %s154 = sphi 0, %s152
      %s155 = sphi 0, %s154
      %s169 = sphi 0, %s155
      %s175 = sphi 0, %s177
      %s178 = sphi 0, %s175
      %s179 = sphi 0, %s178
      %s195 = sphi 0, %s179
    $region4: #{pair_classifier_forward.1} parent=1 // loop_header_branch
      %16 = sbr.rel (%p14) target = $region8
    $region5: #{pair_classifier_forward.1} parent=1 // loop_body
      %s18 = ssub.s32 %s13, 1
      %s19 = ssub.s32 %s13, 2
      %s20 = sadd.s32 %s13, 1
      %s21 = ssub.s32 %s13, %s20
      %p22 = scmp.eq.s32.totalorder %s21, 0
      %s24 = sadd.s32 %s23, 1
      %s25 = scalar_select %p22, %s23, %s24
      %p28 = pneg %p22
      %p29 = scmp.eq.s32.totalorder %s13, 1
      %p30 = por %p28, %p29
      %p31 = scmp.ne.s32.totalorder %s23, %s26
      %p32 = scmp.eq.s32.totalorder %s13, 0
      %p33 = por %p31, %p32
      %p34 = scmp.ne.s32.totalorder %s23, %s26
      %p35 = scmp.eq.s32.totalorder %s18, 1
      %p36 = por %p34, %p35
      %p37 = scmp.ne.s32.totalorder %s26, %s27
      %p38 = scmp.eq.s32.totalorder %s18, 0
      %p39 = por %p37, %p38
      %p40 = scmp.ne.s32.totalorder %s26, %s27
      %p41 = scmp.eq.s32.totalorder %s19, 1
      %p42 = por %p40, %p41
      %p44 = scmp.ne.s32.totalorder %s27, %s43
      %p45 = scmp.eq.s32.totalorder %s19, 0
      %p46 = por %p44, %p45
      %s48 = sadd.s32 %s47, 1
      %p51 = scmp.eq.s32.totalorder %s13, 1
      %p52 = scmp.ne.s32.totalorder %s47, %s49
      %p53 = scmp.eq.s32.totalorder %s13, 0
      %p54 = por %p52, %p53
      %p55 = scmp.ne.s32.totalorder %s47, %s49
      %p56 = scmp.eq.s32.totalorder %s18, 1
      %p57 = por %p55, %p56
      %p58 = scmp.ne.s32.totalorder %s49, %s50
      %p59 = scmp.eq.s32.totalorder %s18, 0
      %p60 = por %p58, %p59
      %p61 = scmp.ne.s32.totalorder %s49, %s50
      %p62 = scmp.eq.s32.totalorder %s19, 1
      %p63 = por %p61, %p62
      %p65 = scmp.ne.s32.totalorder %s50, %s64
      %p66 = scmp.eq.s32.totalorder %s19, 0
      %p67 = por %p65, %p66
      %s69 = sadd.s32 %s68, 1
      %p72 = scmp.eq.s32.totalorder %s13, 1
      %p73 = scmp.ne.s32.totalorder %s68, %s70
      %p74 = scmp.eq.s32.totalorder %s13, 0
      %p75 = por %p73, %p74
      %p76 = scmp.ne.s32.totalorder %s68, %s70
      %p77 = scmp.eq.s32.totalorder %s18, 1
      %p78 = por %p76, %p77
      %p79 = scmp.ne.s32.totalorder %s70, %s71
      %p80 = scmp.eq.s32.totalorder %s18, 0
      %p81 = por %p79, %p80
      %p82 = scmp.ne.s32.totalorder %s70, %s71
      %p83 = scmp.eq.s32.totalorder %s19, 1
      %p84 = por %p82, %p83
      %p86 = scmp.ne.s32.totalorder %s71, %s85
      %p87 = scmp.eq.s32.totalorder %s19, 0
      %p88 = por %p86, %p87
      %s90 = sadd.s32 %s89, 1
      %p93 = scmp.eq.s32.totalorder %s13, 1
      %p94 = scmp.ne.s32.totalorder %s89, %s91
      %p95 = scmp.eq.s32.totalorder %s13, 0
      %p96 = por %p94, %p95
      %p97 = scmp.ne.s32.totalorder %s89, %s91
      %p98 = scmp.eq.s32.totalorder %s18, 1
      %p99 = por %p97, %p98
      %p100 = scmp.ne.s32.totalorder %s91, %s92
      %p101 = scmp.eq.s32.totalorder %s18, 0
      %p102 = por %p100, %p101
      %p103 = scmp.ne.s32.totalorder %s91, %s92
      %p104 = scmp.eq.s32.totalorder %s19, 1
      %p105 = por %p103, %p104
      %p107 = scmp.ne.s32.totalorder %s92, %s106
      %p108 = scmp.eq.s32.totalorder %s19, 0
      %p109 = por %p107, %p108
      %s111 = sadd.s32 %s110, 1
      %p114 = scmp.eq.s32.totalorder %s13, 1
      %p115 = scmp.ne.s32.totalorder %s110, %s112
      %p116 = scmp.eq.s32.totalorder %s13, 0
      %p117 = por %p115, %p116
      %p118 = scmp.ne.s32.totalorder %s110, %s112
      %p119 = scmp.eq.s32.totalorder %s18, 1
      %p120 = por %p118, %p119
      %p121 = scmp.ne.s32.totalorder %s112, %s113
      %p122 = scmp.eq.s32.totalorder %s18, 0
      %p123 = por %p121, %p122
      %p124 = scmp.ne.s32.totalorder %s112, %s113
      %p125 = scmp.eq.s32.totalorder %s19, 1
      %p126 = por %p124, %p125
      %p128 = scmp.ne.s32.totalorder %s113, %s127
      %p129 = scmp.eq.s32.totalorder %s19, 0
      %p130 = por %p128, %p129
      %s132 = sadd.s32 %s131, 1
      %p135 = scmp.eq.s32.totalorder %s13, 1
      %p136 = scmp.ne.s32.totalorder %s131, %s133
      %p137 = scmp.eq.s32.totalorder %s13, 0
      %p138 = por %p136, %p137
      %p139 = scmp.ne.s32.totalorder %s131, %s133
      %p140 = scmp.eq.s32.totalorder %s18, 1
      %p141 = por %p139, %p140
      %p142 = scmp.ne.s32.totalorder %s133, %s134
      %p143 = scmp.eq.s32.totalorder %s18, 0
      %p144 = por %p142, %p143
      %p145 = scmp.ne.s32.totalorder %s133, %s134
      %p146 = scmp.eq.s32.totalorder %s19, 1
      %p147 = por %p145, %p146
      %p149 = scmp.ne.s32.totalorder %s134, %s148
      %p150 = scmp.eq.s32.totalorder %s19, 0
      %p151 = por %p149, %p150
      %s153 = sadd.s32 %s152, 1
      %p156 = scmp.eq.s32.totalorder %s13, 1
      %p157 = scmp.ne.s32.totalorder %s152, %s154
      %p158 = scmp.eq.s32.totalorder %s13, 0
      %p159 = por %p157, %p158
      %p160 = scmp.ne.s32.totalorder %s152, %s154
      %p161 = scmp.eq.s32.totalorder %s18, 1
      %p162 = por %p160, %p161
      %p163 = scmp.ne.s32.totalorder %s154, %s155
      %p164 = scmp.eq.s32.totalorder %s18, 0
      %p165 = por %p163, %p164
      %p166 = scmp.ne.s32.totalorder %s154, %s155
      %p167 = scmp.eq.s32.totalorder %s19, 1
      %p168 = por %p166, %p167
      %p170 = scmp.ne.s32.totalorder %s155, %s169
      %p171 = scmp.eq.s32.totalorder %s19, 0
      %p172 = por %p170, %p171
      %s173 = ssub.s32 %s13, %s20
      %p174 = scmp.eq.s32.totalorder %s173, 0
      %s176 = sadd.s32 %s175, 1
      %s177 = scalar_select %p174, %s175, %s176
      %p180 = pneg %p174
      %p181 = scmp.eq.s32.totalorder %s13, 1
      %p182 = por %p180, %p181
      %p183 = scmp.ne.s32.totalorder %s175, %s178
      %p184 = scmp.eq.s32.totalorder %s13, 0
      %p185 = por %p183, %p184
      %p186 = scmp.ne.s32.totalorder %s175, %s178
      %p187 = scmp.eq.s32.totalorder %s18, 1
      %p188 = por %p186, %p187
      %p189 = scmp.ne.s32.totalorder %s178, %s179
      %p190 = scmp.eq.s32.totalorder %s18, 0
      %p191 = por %p189, %p190
      %p192 = scmp.ne.s32.totalorder %s178, %s179
      %p193 = scmp.eq.s32.totalorder %s19, 1
      %p194 = por %p192, %p193
      %p196 = scmp.ne.s32.totalorder %s179, %s195
      %p197 = scmp.eq.s32.totalorder %s19, 0
      %p198 = por %p196, %p197
      %p199 = scmp.le.s32.totalorder 1, %s13
      %p200 = scmp.lt.s32.totalorder %s13, 3
      %p201 = pnand %p199, %p200
      %p202 = pneg %p201
      // Predicated region
      $region9: #{pair_classifier_forward.1} parent=5 // pred_check
        _
      $region10: #{pair_classifier_forward.1} parent=5 // pred_check_branch
        %204 = sbr.rel (%p201) target = $region12
      $region11: #{pair_classifier_forward.1} parent=5 // pred_region
        %s205 = ssub.s32 %s13, 1
        // Predicated region
        $region13: #{pair_classifier_forward.1} parent=11 // pred_check
          %p206 = pneg %p60
        $region14: #{pair_classifier_forward.1} parent=11 // pred_check_branch
          %208 = sbr.rel (%p206) target = $region16
        $region15: #{pair_classifier_forward.1} parent=11 // pred_region
          _
        $region16: #{pair_classifier_forward.1} parent=11 // pred_fallthru
          _
        // Predicated region
        $region17: #{pair_classifier_forward.1} parent=11 // pred_check
          %p209 = pneg %p81
        $region18: #{pair_classifier_forward.1} parent=11 // pred_check_branch
          %211 = sbr.rel (%p209) target = $region20
        $region19: #{pair_classifier_forward.1} parent=11 // pred_region
          _
        $region20: #{pair_classifier_forward.1} parent=11 // pred_fallthru
          _
        // Predicated region
        $region21: #{pair_classifier_forward.1} parent=11 // pred_check
          %p212 = pneg %p102
        $region22: #{pair_classifier_forward.1} parent=11 // pred_check_branch
          %214 = sbr.rel (%p212) target = $region24
        $region23: #{pair_classifier_forward.1} parent=11 // pred_region
          _
        $region24: #{pair_classifier_forward.1} parent=11 // pred_fallthru
          _
        // Predicated region
        $region25: #{pair_classifier_forward.1} parent=11 // pred_check
          %p215 = pneg %p123
        $region26: #{pair_classifier_forward.1} parent=11 // pred_check_branch
          %217 = sbr.rel (%p215) target = $region28
        $region27: #{pair_classifier_forward.1} parent=11 // pred_region
          _
        $region28: #{pair_classifier_forward.1} parent=11 // pred_fallthru
          _
        // Predicated region
        $region29: #{pair_classifier_forward.1} parent=11 // pred_check
          %p218 = pneg %p144
        $region30: #{pair_classifier_forward.1} parent=11 // pred_check_branch
          %220 = sbr.rel (%p218) target = $region32
        $region31: #{pair_classifier_forward.1} parent=11 // pred_region
          _
        $region32: #{pair_classifier_forward.1} parent=11 // pred_fallthru
          _
        // Predicated region
        $region33: #{pair_classifier_forward.1} parent=11 // pred_check
          %p221 = pneg %p165
        $region34: #{pair_classifier_forward.1} parent=11 // pred_check_branch
          %223 = sbr.rel (%p221) target = $region36
        $region35: #{pair_classifier_forward.1} parent=11 // pred_region
          _
        $region36: #{pair_classifier_forward.1} parent=11 // pred_fallthru
          _
      $region12: #{pair_classifier_forward.1} parent=5 // pred_fallthru
        _
      %p224 = scmp.lt.s32.totalorder %s13, 2
      // Predicated region
      $region37: #{pair_classifier_forward.1} parent=5 // pred_check
        %p225 = pneg %p224
      $region38: #{pair_classifier_forward.1} parent=5 // pred_check_branch
        %227 = sbr.rel (%p225) target = $region40
      $region39: #{pair_classifier_forward.1} parent=5 // pred_region
        // Predicated region
        $region41: #{pair_classifier_forward.1} parent=39 // pred_check
          %p228 = pneg %p33
        $region42: #{pair_classifier_forward.1} parent=39 // pred_check_branch
          %230 = sbr.rel (%p228) target = $region44
        $region43: #{pair_classifier_forward.1} parent=39 // pred_region
          %s231 = smul.u32 2, %s13
          %s232 = ssub.s32 3, %s231
          %p233 = scmp.lt.s32.totalorder %s232, 2
          %s234 = scalar_select %p233, %s232, 2
          %s235 = smul.u32 128, %s234
          %p236 = scmp.lt.s32.totalorder %s231, 2
          %s237 = scalar_select %p236, %s231, 2
          %s238 = smul.addr %s237, 8
          %s239 = scalar_lea.vmem %s0, %s238
          %s240 = smul.u32 2, %s13
          %s241 = ssub.s32 3, %s240
          %p242 = scmp.lt.s32.totalorder %s241, 2
          %s243 = scalar_select %p242, %s241, 2
          %s244 = smul.u32 128, %s243
        $region44: #{pair_classifier_forward.1} parent=39 // pred_fallthru
          _
      $region40: #{pair_classifier_forward.1} parent=5 // pred_fallthru
        _
      %p245 = scmp.le.s32.totalorder 1, %s13
      %p246 = scmp.lt.s32.totalorder %s13, 3
      %p247 = pnand %p245, %p246
      %p248 = pneg %p247
      // Predicated region
      $region45: #{pair_classifier_forward.1} parent=5 // pred_check
        _
      $region46: #{pair_classifier_forward.1} parent=5 // pred_check_branch
        %250 = sbr.rel (%p247) target = $region48
      $region47: #{pair_classifier_forward.1} parent=5 // pred_region
        %s251 = ssub.s32 %s13, 1
        %s252 = smul.u32 2, %s18
        %s253 = ssub.s32 3, %s252
        %p254 = scmp.lt.s32.totalorder %s253, 2
        %s255 = scalar_select %p254, %s253, 2
        %s256 = smul.u32 128, %s255
        %p257 = scmp.lt.s32.totalorder %s252, 2
        %s258 = scalar_select %p257, %s252, 2
        %s259 = smul.addr %s258, 8
        %s260 = scalar_lea.vmem %s0, %s259
        %p261 = pneg %p39
        %p262 = pneg %p36
        %p263 = pneg %p60
        %p264 = pneg %p57
        %p265 = pneg %p81
        %p266 = pneg %p78
        %p267 = pneg %p102
        %p268 = pneg %p99
        %p269 = pneg %p123
        %p270 = pneg %p120
        %p271 = pneg %p144
        %p272 = pneg %p141
        %p273 = pneg %p165
        %p274 = pneg %p162
        %p275 = pneg %p191
        %p276 = pneg %p188
        %s277 = sand.u32 %s178, 1
        %s278 = sand.u32 %s178, 1
        %s279 = smul.addr %s278, 8
        %s280 = scalar_lea.vmem [#allocation2], %s279
        %s281 = smul.u32 2, %s18
        %s282 = ssub.s32 3, %s281
        %p283 = scmp.lt.s32.totalorder %s282, 2
        %s284 = scalar_select %p283, %s282, 2
        %s285 = smul.u32 128, %s284
        %p286 = scmp.lt.s32.totalorder %s281, 2
        %s287 = scalar_select %p286, %s281, 2
        %s288 = smul.addr %s287, 8
        %s289 = scalar_lea.vmem %s0, %s288
        %s290 = smul.u32 2, %s18
        %s291 = ssub.s32 3, %s290
        %p292 = scmp.lt.s32.totalorder %s291, 2
        %s293 = scalar_select %p292, %s291, 2
        %s294 = smul.u32 128, %s293
        %s295 = smul.u32 2, %s18
        %s296 = ssub.s32 3, %s295
        %p297 = scmp.lt.s32.totalorder %s296, 2
        %s298 = scalar_select %p297, %s296, 2
        %s299 = smul.u32 64, %s298
        %v301 = vld [vmem:[%s289] sm:$0xff]
        %v302 = vld [vmem:[%s289 + $0x8] sm:$0xff]
        %v303 = vpack.c.bf16 %v302, %v301
        %v304 = vld [vmem:[%s1] sm:$0xff]
        %v305 = vld [vmem:[%s1 + $0x8] sm:$0xff]
        %v306 = vld [vmem:[%s1 + $0x10] sm:$0xff]
        %v307 = vld [vmem:[%s1 + $0x18] sm:$0xff]
        %v308 = vld [vmem:[%s1 + $0x20] sm:$0xff]
        %v309 = vld [vmem:[%s1 + $0x28] sm:$0xff]
        %v310 = vld [vmem:[%s1 + $0x30] sm:$0xff]
        %v311 = vld [vmem:[%s1 + $0x38] sm:$0xff]
        %v312 = vld [vmem:[%s2] sm:$0xf]
        %v314 = vlaneseq
        %v315 = vshrl.u32 %v314, 7
        %v316 = vsub.s32 0, %v315
        %v317 = vrot.slane %v312, %v316
        %v318 = vlaneseq
        %v319 = vshrl.u32 %v318, 7
        %v320 = vsub.s32 1, %v319
        %v321 = vrot.slane %v312, %v320
        %v322 = vlaneseq
        %v323 = vshrl.u32 %v322, 7
        %v324 = vsub.s32 2, %v323
        %v325 = vrot.slane %v312, %v324
        %v326 = vlaneseq
        %v327 = vshrl.u32 %v326, 7
        %v328 = vsub.s32 3, %v327
        %v329 = vrot.slane %v312, %v328
        %v342 = vunpack.c.l.b16 %v304
        %v343 = vunpack.c.h.b16 %v304
        %v344 = vunpack.c.l.b16 %v305
        %v345 = vunpack.c.h.b16 %v305
        %v346 = vunpack.c.l.b16 %v306
        %v347 = vunpack.c.h.b16 %v306
        %v348 = vunpack.c.l.b16 %v307
        %v349 = vunpack.c.h.b16 %v307
        %v350 = vunpack.c.l.b16 %v308
        %v351 = vunpack.c.h.b16 %v308
        %v352 = vunpack.c.l.b16 %v309
        %v353 = vunpack.c.h.b16 %v309
        %v354 = vunpack.c.l.b16 %v310
        %v355 = vunpack.c.h.b16 %v310
        %v356 = vunpack.c.l.b16 %v311
        %v357 = vunpack.c.h.b16 %v311
        %v358 = vpack.c.b16 %v346, %v342
        %v359 = vpack.c.b16 %v347, %v343
        %v360 = vpack.c.b16 %v348, %v344
        %v361 = vpack.c.b16 %v349, %v345
        %v362 = vpack.c.b16 %v354, %v350
        %v363 = vpack.c.b16 %v355, %v351
        %v364 = vpack.c.b16 %v356, %v352
        %v365 = vpack.c.b16 %v357, %v353
        %vm374 = vcmask 261120
        %v376 = vsel %vm374, %v303, 0
        %378 = vmatprep.subr.bf16.mxu0 %v359
        %379 = vmatpush1.bf16.msra.mxu0 %v358
        %380 = vmatprep.subr.bf16.mxu0 %v363
        %381 = vmatpush1.bf16.msra.mxu0 %v362
        %382 = vmatprep.subr.bf16.mxu0 0
        %383 = vmatpush1.bf16.msra.mxu0 0
        %384 = vmatprep.subr.bf16.mxu0 0
        %385 = vmatpush1.bf16.msra.mxu0 0
        %386 = vmatprep.subr.bf16.mxu0 0
        %387 = vmatpush1.bf16.msra.mxu0 0
        %388 = vmatprep.subr.bf16.mxu0 0
        %389 = vmatpush1.bf16.msra.mxu0 0
        %390 = vmatprep.subr.bf16.mxu0 0
        %391 = vmatpush1.bf16.msra.mxu0 0
        %392 = vmatprep.subr.bf16.mxu0 0
        %393 = vmatpush1.bf16.msra.mxu0 0
        %394 = vmatprep.subr.bf16.mxu0 0
        %395 = vmatpush1.bf16.msra.mxu0 0
        %396 = vmatprep.subr.bf16.mxu0 0
        %397 = vmatpush1.bf16.msra.mxu0 0
        %398 = vmatprep.subr.bf16.mxu0 0
        %399 = vmatpush1.bf16.msra.mxu0 0
        %400 = vmatprep.subr.bf16.mxu0 0
        %401 = vmatpush1.bf16.msra.mxu0 0
        %402 = vmatprep.subr.bf16.mxu0 0
        %403 = vmatpush1.bf16.msra.mxu0 0
        %404 = vmatprep.subr.bf16.mxu0 0
        %405 = vmatpush1.bf16.msra.mxu0 0
        %406 = vmatprep.subr.bf16.mxu0 0
        %407 = vmatpush1.bf16.msra.mxu0 0
        %408 = vmatprep.subr.bf16.mxu0 0
        %409 = vmatpush1.bf16.msra.mxu0 0
        %410 = vmatprep.mubr.bf16.mxu0 0
        %411 = vmatmul.mubr.bf16.gmra.mrb[0].mxu0 %v376
        %v412 = vpop.f32.mrb[0].mxu0
        %v413 = vadd.f32 %v317, %v412
        %v414 = vpop.f32.mrb[0].mxu0
        %v415 = vadd.f32 %v321, %v414
        %v416 = vpop.f32.mrb[0].mxu0
        %v417 = vadd.f32 %v317, %v416
        %v418 = vpop.f32.mrb[0].mxu0
        %v419 = vadd.f32 %v321, %v418
        %420 = vdwg.mxu0
        %421 = vmatprep.subr.bf16.mxu0 %v361
        %422 = vmatpush1.bf16.msra.mxu0 %v360
        %423 = vmatprep.subr.bf16.mxu0 %v365
        %424 = vmatpush1.bf16.msra.mxu0 %v364
        %425 = vmatprep.subr.bf16.mxu0 0
        %426 = vmatpush1.bf16.msra.mxu0 0
        %427 = vmatprep.subr.bf16.mxu0 0
        %428 = vmatpush1.bf16.msra.mxu0 0
        %429 = vmatprep.subr.bf16.mxu0 0
        %430 = vmatpush1.bf16.msra.mxu0 0
        %431 = vmatprep.subr.bf16.mxu0 0
        %432 = vmatpush1.bf16.msra.mxu0 0
        %433 = vmatprep.subr.bf16.mxu0 0
        %434 = vmatpush1.bf16.msra.mxu0 0
        %435 = vmatprep.subr.bf16.mxu0 0
        %436 = vmatpush1.bf16.msra.mxu0 0
        %437 = vmatprep.subr.bf16.mxu0 0
        %438 = vmatpush1.bf16.msra.mxu0 0
        %439 = vmatprep.subr.bf16.mxu0 0
        %440 = vmatpush1.bf16.msra.mxu0 0
        %441 = vmatprep.subr.bf16.mxu0 0
        %442 = vmatpush1.bf16.msra.mxu0 0
        %443 = vmatprep.subr.bf16.mxu0 0
        %444 = vmatpush1.bf16.msra.mxu0 0
        %445 = vmatprep.subr.bf16.mxu0 0
        %446 = vmatpush1.bf16.msra.mxu0 0
        %447 = vmatprep.subr.bf16.mxu0 0
        %448 = vmatpush1.bf16.msra.mxu0 0
        %449 = vmatprep.subr.bf16.mxu0 0
        %450 = vmatpush1.bf16.msra.mxu0 0
        %451 = vmatprep.subr.bf16.mxu0 0
        %452 = vmatpush1.bf16.msra.mxu0 0
        %453 = vmatprep.mubr.bf16.mxu0 0
        %454 = vmatmul.mubr.bf16.gmra.mrb[0].mxu0 %v376
        %v455 = vpop.f32.mrb[0].mxu0
        %v456 = vadd.f32 %v325, %v455
        %v457 = vpop.f32.mrb[0].mxu0
        %v458 = vadd.f32 %v329, %v457
        %v459 = vpop.f32.mrb[0].mxu0
        %v460 = vadd.f32 %v325, %v459
        %v461 = vpop.f32.mrb[0].mxu0
        %v462 = vadd.f32 %v329, %v461
        %463 = vdwg.mxu0
        %v464 = vmax.f32 %v413, 0.0
        %v465 = vmax.f32 %v415, 0.0
        %v466 = vmax.f32 %v456, 0.0
        %v467 = vmax.f32 %v458, 0.0
        %v468 = vmax.f32 %v417, 0.0
        %v469 = vmax.f32 %v419, 0.0
        %v470 = vmax.f32 %v460, 0.0
        %v471 = vmax.f32 %v462, 0.0
        %v472 = vpack.c.bf16 %v468, %v464
        %v473 = vpack.c.bf16 %v469, %v465
        %v474 = vpack.c.bf16 %v470, %v466
        %v475 = vpack.c.bf16 %v471, %v467
        %v476 = vld [vmem:[%s3] sm:$0xff]
        %v477 = vld [vmem:[%s3 + $0x8] sm:$0xff]
        %v478 = vld [vmem:[%s3 + $0x10] sm:$0xff]
        %v479 = vld [vmem:[%s3 + $0x18] sm:$0xff]
        %v480 = vld [vmem:[%s3 + $0x20] sm:$0xff]
        %v481 = vld [vmem:[%s3 + $0x28] sm:$0xff]
        %v482 = vld [vmem:[%s3 + $0x30] sm:$0xff]
        %v483 = vld [vmem:[%s3 + $0x38] sm:$0xff]
        %v484 = vld [vmem:[%s3 + $0x40] sm:$0xff]
        %v485 = vld [vmem:[%s3 + $0x48] sm:$0xff]
        %v486 = vld [vmem:[%s3 + $0x50] sm:$0xff]
        %v487 = vld [vmem:[%s3 + $0x58] sm:$0xff]
        %v488 = vld [vmem:[%s3 + $0x60] sm:$0xff]
        %v489 = vld [vmem:[%s3 + $0x68] sm:$0xff]
        %v490 = vld [vmem:[%s3 + $0x70] sm:$0xff]
        %v491 = vld [vmem:[%s3 + $0x78] sm:$0xff]
        %v492 = vld [vmem:[%s3 + $0x80] sm:$0xff]
        %v493 = vld [vmem:[%s3 + $0x88] sm:$0xff]
        %v494 = vld [vmem:[%s3 + $0x90] sm:$0xff]
        %v495 = vld [vmem:[%s3 + $0x98] sm:$0xff]
        %v496 = vld [vmem:[%s3 + $0xa0] sm:$0xff]
        %v497 = vld [vmem:[%s3 + $0xa8] sm:$0xff]
        %v498 = vld [vmem:[%s3 + $0xb0] sm:$0xff]
        %v499 = vld [vmem:[%s3 + $0xb8] sm:$0xff]
        %v500 = vld [vmem:[%s3 + $0xc0] sm:$0xff]
        %v501 = vld [vmem:[%s3 + $0xc8] sm:$0xff]
        %v502 = vld [vmem:[%s3 + $0xd0] sm:$0xff]
        %v503 = vld [vmem:[%s3 + $0xd8] sm:$0xff]
        %v504 = vld [vmem:[%s3 + $0xe0] sm:$0xff]
        %v505 = vld [vmem:[%s3 + $0xe8] sm:$0xff]
        %v506 = vld [vmem:[%s3 + $0xf0] sm:$0xff]
        %v507 = vld [vmem:[%s3 + $0xf8] sm:$0xff]
        %v508 = vld [vmem:[%s3 + $0x100] sm:$0xff]
        %v509 = vld [vmem:[%s3 + $0x108] sm:$0xff]
        %v510 = vld [vmem:[%s3 + $0x110] sm:$0xff]
        %v511 = vld [vmem:[%s3 + $0x118] sm:$0xff]
        %v512 = vld [vmem:[%s3 + $0x120] sm:$0xff]
        %v513 = vld [vmem:[%s3 + $0x128] sm:$0xff]
        %v514 = vld [vmem:[%s3 + $0x130] sm:$0xff]
        %v515 = vld [vmem:[%s3 + $0x138] sm:$0xff]
        %v516 = vld [vmem:[%s3 + $0x140] sm:$0xff]
        %v517 = vld [vmem:[%s3 + $0x148] sm:$0xff]
        %v518 = vld [vmem:[%s3 + $0x150] sm:$0xff]
        %v519 = vld [vmem:[%s3 + $0x158] sm:$0xff]
        %v520 = vld [vmem:[%s3 + $0x160] sm:$0xff]
        %v521 = vld [vmem:[%s3 + $0x168] sm:$0xff]
        %v522 = vld [vmem:[%s3 + $0x170] sm:$0xff]
        %v523 = vld [vmem:[%s3 + $0x178] sm:$0xff]
        %v524 = vld [vmem:[%s3 + $0x180] sm:$0xff]
        %v525 = vld [vmem:[%s3 + $0x188] sm:$0xff]
        %v526 = vld [vmem:[%s3 + $0x190] sm:$0xff]
        %v527 = vld [vmem:[%s3 + $0x198] sm:$0xff]
        %v528 = vld [vmem:[%s3 + $0x1a0] sm:$0xff]
        %v529 = vld [vmem:[%s3 + $0x1a8] sm:$0xff]
        %v530 = vld [vmem:[%s3 + $0x1b0] sm:$0xff]
        %v531 = vld [vmem:[%s3 + $0x1b8] sm:$0xff]
        %v532 = vld [vmem:[%s3 + $0x1c0] sm:$0xff]
        %v533 = vld [vmem:[%s3 + $0x1c8] sm:$0xff]
        %v534 = vld [vmem:[%s3 + $0x1d0] sm:$0xff]
        %v535 = vld [vmem:[%s3 + $0x1d8] sm:$0xff]
        %v536 = vld [vmem:[%s3 + $0x1e0] sm:$0xff]
        %v537 = vld [vmem:[%s3 + $0x1e8] sm:$0xff]
        %v538 = vld [vmem:[%s3 + $0x1f0] sm:$0xff]
        %v539 = vld [vmem:[%s3 + $0x1f8] sm:$0xff]
        %v540 = vld [vmem:[%s4] sm:$0x3]
        %v542 = vlaneseq
        %v543 = vshrl.u32 %v542, 7
        %v544 = vsub.s32 0, %v543
        %v545 = vrot.slane %v540, %v544
        %v546 = vlaneseq
        %v547 = vshrl.u32 %v546, 7
        %v548 = vsub.s32 1, %v547
        %v549 = vrot.slane %v540, %v548
        %v616 = vunpack.c.l.b16 %v476
        %v617 = vunpack.c.h.b16 %v476
        %v618 = vunpack.c.l.b16 %v477
        %v619 = vunpack.c.h.b16 %v477
        %v620 = vunpack.c.l.b16 %v478
        %v621 = vunpack.c.h.b16 %v478
        %v622 = vunpack.c.l.b16 %v479
        %v623 = vunpack.c.h.b16 %v479
        %v624 = vunpack.c.l.b16 %v480
        %v625 = vunpack.c.h.b16 %v480
        %v626 = vunpack.c.l.b16 %v481
        %v627 = vunpack.c.h.b16 %v481
        %v628 = vunpack.c.l.b16 %v482
        %v629 = vunpack.c.h.b16 %v482
        %v630 = vunpack.c.l.b16 %v483
        %v631 = vunpack.c.h.b16 %v483
        %v632 = vunpack.c.l.b16 %v484
        %v633 = vunpack.c.h.b16 %v484
        %v634 = vunpack.c.l.b16 %v485
        %v635 = vunpack.c.h.b16 %v485
        %v636 = vunpack.c.l.b16 %v486
        %v637 = vunpack.c.h.b16 %v486
        %v638 = vunpack.c.l.b16 %v487
        %v639 = vunpack.c.h.b16 %v487
        %v640 = vunpack.c.l.b16 %v488
        %v641 = vunpack.c.h.b16 %v488
        %v642 = vunpack.c.l.b16 %v489
        %v643 = vunpack.c.h.b16 %v489
        %v644 = vunpack.c.l.b16 %v490
        %v645 = vunpack.c.h.b16 %v490
        %v646 = vunpack.c.l.b16 %v491
        %v647 = vunpack.c.h.b16 %v491
        %v648 = vunpack.c.l.b16 %v492
        %v649 = vunpack.c.h.b16 %v492
        %v650 = vunpack.c.l.b16 %v493
        %v651 = vunpack.c.h.b16 %v493
        %v652 = vunpack.c.l.b16 %v494
        %v653 = vunpack.c.h.b16 %v494
        %v654 = vunpack.c.l.b16 %v495
        %v655 = vunpack.c.h.b16 %v495
        %v656 = vunpack.c.l.b16 %v496
        %v657 = vunpack.c.h.b16 %v496
        %v658 = vunpack.c.l.b16 %v497
        %v659 = vunpack.c.h.b16 %v497
        %v660 = vunpack.c.l.b16 %v498
        %v661 = vunpack.c.h.b16 %v498
        %v662 = vunpack.c.l.b16 %v499
        %v663 = vunpack.c.h.b16 %v499
        %v664 = vunpack.c.l.b16 %v500
        %v665 = vunpack.c.h.b16 %v500
        %v666 = vunpack.c.l.b16 %v501
        %v667 = vunpack.c.h.b16 %v501
        %v668 = vunpack.c.l.b16 %v502
        %v669 = vunpack.c.h.b16 %v502
        %v670 = vunpack.c.l.b16 %v503
        %v671 = vunpack.c.h.b16 %v503
        %v672 = vunpack.c.l.b16 %v504
        %v673 = vunpack.c.h.b16 %v504
        %v674 = vunpack.c.l.b16 %v505
        %v675 = vunpack.c.h.b16 %v505
        %v676 = vunpack.c.l.b16 %v506
        %v677 = vunpack.c.h.b16 %v506
        %v678 = vunpack.c.l.b16 %v507
        %v679 = vunpack.c.h.b16 %v507
        %v680 = vunpack.c.l.b16 %v508
        %v681 = vunpack.c.h.b16 %v508
        %v682 = vunpack.c.l.b16 %v509
        %v683 = vunpack.c.h.b16 %v509
        %v684 = vunpack.c.l.b16 %v510
        %v685 = vunpack.c.h.b16 %v510
        %v686 = vunpack.c.l.b16 %v511
        %v687 = vunpack.c.h.b16 %v511
        %v688 = vunpack.c.l.b16 %v512
        %v689 = vunpack.c.h.b16 %v512
        %v690 = vunpack.c.l.b16 %v513
        %v691 = vunpack.c.h.b16 %v513
        %v692 = vunpack.c.l.b16 %v514
        %v693 = vunpack.c.h.b16 %v514
        %v694 = vunpack.c.l.b16 %v515
        %v695 = vunpack.c.h.b16 %v515
        %v696 = vunpack.c.l.b16 %v516
        %v697 = vunpack.c.h.b16 %v516
        %v698 = vunpack.c.l.b16 %v517
        %v699 = vunpack.c.h.b16 %v517
        %v700 = vunpack.c.l.b16 %v518
        %v701 = vunpack.c.h.b16 %v518
        %v702 = vunpack.c.l.b16 %v519
        %v703 = vunpack.c.h.b16 %v519
        %v704 = vunpack.c.l.b16 %v520
        %v705 = vunpack.c.h.b16 %v520
        %v706 = vunpack.c.l.b16 %v521
        %v707 = vunpack.c.h.b16 %v521
        %v708 = vunpack.c.l.b16 %v522
        %v709 = vunpack.c.h.b16 %v522
        %v710 = vunpack.c.l.b16 %v523
        %v711 = vunpack.c.h.b16 %v523
        %v712 = vunpack.c.l.b16 %v524
        %v713 = vunpack.c.h.b16 %v524
        %v714 = vunpack.c.l.b16 %v525
        %v715 = vunpack.c.h.b16 %v525
        %v716 = vunpack.c.l.b16 %v526
        %v717 = vunpack.c.h.b16 %v526
        %v718 = vunpack.c.l.b16 %v527
        %v719 = vunpack.c.h.b16 %v527
        %v720 = vunpack.c.l.b16 %v528
        %v721 = vunpack.c.h.b16 %v528
        %v722 = vunpack.c.l.b16 %v529
        %v723 = vunpack.c.h.b16 %v529
        %v724 = vunpack.c.l.b16 %v530
        %v725 = vunpack.c.h.b16 %v530
        %v726 = vunpack.c.l.b16 %v531
        %v727 = vunpack.c.h.b16 %v531
        %v728 = vunpack.c.l.b16 %v532
        %v729 = vunpack.c.h.b16 %v532
        %v730 = vunpack.c.l.b16 %v533
        %v731 = vunpack.c.h.b16 %v533
        %v732 = vunpack.c.l.b16 %v534
        %v733 = vunpack.c.h.b16 %v534
        %v734 = vunpack.c.l.b16 %v535
        %v735 = vunpack.c.h.b16 %v535
        %v736 = vunpack.c.l.b16 %v536
        %v737 = vunpack.c.h.b16 %v536
        %v738 = vunpack.c.l.b16 %v537
        %v739 = vunpack.c.h.b16 %v537
        %v740 = vunpack.c.l.b16 %v538
        %v741 = vunpack.c.h.b16 %v538
        %v742 = vunpack.c.l.b16 %v539
        %v743 = vunpack.c.h.b16 %v539
        %v744 = vpack.c.b16 %v618, %v616
        %v745 = vpack.c.b16 %v619, %v617
        %v746 = vpack.c.b16 %v622, %v620
        %v747 = vpack.c.b16 %v623, %v621
        %v748 = vpack.c.b16 %v626, %v624
        %v749 = vpack.c.b16 %v627, %v625
        %v750 = vpack.c.b16 %v630, %v628
        %v751 = vpack.c.b16 %v631, %v629
        %v752 = vpack.c.b16 %v634, %v632
        %v753 = vpack.c.b16 %v635, %v633
        %v754 = vpack.c.b16 %v638, %v636
        %v755 = vpack.c.b16 %v639, %v637
        %v756 = vpack.c.b16 %v642, %v640
        %v757 = vpack.c.b16 %v643, %v641
        %v758 = vpack.c.b16 %v646, %v644
        %v759 = vpack.c.b16 %v647, %v645
        %v760 = vpack.c.b16 %v650, %v648
        %v761 = vpack.c.b16 %v651, %v649
        %v762 = vpack.c.b16 %v654, %v652
        %v763 = vpack.c.b16 %v655, %v653
        %v764 = vpack.c.b16 %v658, %v656
        %v765 = vpack.c.b16 %v659, %v657
        %v766 = vpack.c.b16 %v662, %v660
        %v767 = vpack.c.b16 %v663, %v661
        %v768 = vpack.c.b16 %v666, %v664
        %v769 = vpack.c.b16 %v667, %v665
        %v770 = vpack.c.b16 %v670, %v668
        %v771 = vpack.c.b16 %v671, %v669
        %v772 = vpack.c.b16 %v674, %v672
        %v773 = vpack.c.b16 %v675, %v673
        %v774 = vpack.c.b16 %v678, %v676
        %v775 = vpack.c.b16 %v679, %v677
        %v776 = vpack.c.b16 %v682, %v680
        %v777 = vpack.c.b16 %v683, %v681
        %v778 = vpack.c.b16 %v686, %v684
        %v779 = vpack.c.b16 %v687, %v685
        %v780 = vpack.c.b16 %v690, %v688
        %v781 = vpack.c.b16 %v691, %v689
        %v782 = vpack.c.b16 %v694, %v692
        %v783 = vpack.c.b16 %v695, %v693
        %v784 = vpack.c.b16 %v698, %v696
        %v785 = vpack.c.b16 %v699, %v697
        %v786 = vpack.c.b16 %v702, %v700
        %v787 = vpack.c.b16 %v703, %v701
        %v788 = vpack.c.b16 %v706, %v704
        %v789 = vpack.c.b16 %v707, %v705
        %v790 = vpack.c.b16 %v710, %v708
        %v791 = vpack.c.b16 %v711, %v709
        %v792 = vpack.c.b16 %v714, %v712
        %v793 = vpack.c.b16 %v715, %v713
        %v794 = vpack.c.b16 %v718, %v716
        %v795 = vpack.c.b16 %v719, %v717
        %v796 = vpack.c.b16 %v722, %v720
        %v797 = vpack.c.b16 %v723, %v721
        %v798 = vpack.c.b16 %v726, %v724
        %v799 = vpack.c.b16 %v727, %v725
        %v800 = vpack.c.b16 %v730, %v728
        %v801 = vpack.c.b16 %v731, %v729
        %v802 = vpack.c.b16 %v734, %v732
        %v803 = vpack.c.b16 %v735, %v733
        %v804 = vpack.c.b16 %v738, %v736
        %v805 = vpack.c.b16 %v739, %v737
        %v806 = vpack.c.b16 %v742, %v740
        %v807 = vpack.c.b16 %v743, %v741
        %872 = vmatprep.subr.bf16.mxu0 %v745
        %873 = vmatpush1.bf16.msra.mxu0 %v744
        %874 = vmatprep.subr.bf16.mxu0 %v747
        %875 = vmatpush1.bf16.msra.mxu0 %v746
        %876 = vmatprep.subr.bf16.mxu0 %v749
        %877 = vmatpush1.bf16.msra.mxu0 %v748
        %878 = vmatprep.subr.bf16.mxu0 %v751
        %879 = vmatpush1.bf16.msra.mxu0 %v750
        %880 = vmatprep.subr.bf16.mxu0 %v753
        %881 = vmatpush1.bf16.msra.mxu0 %v752
        %882 = vmatprep.subr.bf16.mxu0 %v755
        %883 = vmatpush1.bf16.msra.mxu0 %v754
        %884 = vmatprep.subr.bf16.mxu0 %v757
        %885 = vmatpush1.bf16.msra.mxu0 %v756
        %886 = vmatprep.subr.bf16.mxu0 %v759
        %887 = vmatpush1.bf16.msra.mxu0 %v758
        %888 = vmatprep.subr.bf16.mxu0 %v761
        %889 = vmatpush1.bf16.msra.mxu0 %v760
        %890 = vmatprep.subr.bf16.mxu0 %v763
        %891 = vmatpush1.bf16.msra.mxu0 %v762
        %892 = vmatprep.subr.bf16.mxu0 %v765
        %893 = vmatpush1.bf16.msra.mxu0 %v764
        %894 = vmatprep.subr.bf16.mxu0 %v767
        %895 = vmatpush1.bf16.msra.mxu0 %v766
        %896 = vmatprep.subr.bf16.mxu0 %v769
        %897 = vmatpush1.bf16.msra.mxu0 %v768
        %898 = vmatprep.subr.bf16.mxu0 %v771
        %899 = vmatpush1.bf16.msra.mxu0 %v770
        %900 = vmatprep.subr.bf16.mxu0 %v773
        %901 = vmatpush1.bf16.msra.mxu0 %v772
        %902 = vmatprep.subr.bf16.mxu0 %v775
        %903 = vmatpush1.bf16.msra.mxu0 %v774
        %904 = vmatprep.mubr.bf16.mxu0 %v473
        %905 = vmatmul.mubr.bf16.gmra.mrb[0].mxu0 %v472
        %v906 = vpop.f32.mrb[0].mxu0
        %v907 = vadd.f32 %v545, %v906
        %v908 = vpop.f32.mrb[0].mxu0
        %v909 = vadd.f32 %v549, %v908
        %v910 = vpop.f32.mrb[0].mxu0
        %v911 = vadd.f32 %v545, %v910
        %v912 = vpop.f32.mrb[0].mxu0
        %v913 = vadd.f32 %v549, %v912
        %914 = vdwg.mxu0
        %915 = vmatprep.subr.bf16.mxu0 %v777
        %916 = vmatpush1.bf16.msra.mxu0 %v776
        %917 = vmatprep.subr.bf16.mxu0 %v779
        %918 = vmatpush1.bf16.msra.mxu0 %v778
        %919 = vmatprep.subr.bf16.mxu0 %v781
        %920 = vmatpush1.bf16.msra.mxu0 %v780
        %921 = vmatprep.subr.bf16.mxu0 %v783
        %922 = vmatpush1.bf16.msra.mxu0 %v782
        %923 = vmatprep.subr.bf16.mxu0 %v785
        %924 = vmatpush1.bf16.msra.mxu0 %v784
        %925 = vmatprep.subr.bf16.mxu0 %v787
        %926 = vmatpush1.bf16.msra.mxu0 %v786
        %927 = vmatprep.subr.bf16.mxu0 %v789
        %928 = vmatpush1.bf16.msra.mxu0 %v788
        %929 = vmatprep.subr.bf16.mxu0 %v791
        %930 = vmatpush1.bf16.msra.mxu0 %v790
        %931 = vmatprep.subr.bf16.mxu0 %v793
        %932 = vmatpush1.bf16.msra.mxu0 %v792
        %933 = vmatprep.subr.bf16.mxu0 %v795
        %934 = vmatpush1.bf16.msra.mxu0 %v794
        %935 = vmatprep.subr.bf16.mxu0 %v797
        %936 = vmatpush1.bf16.msra.mxu0 %v796
        %937 = vmatprep.subr.bf16.mxu0 %v799
        %938 = vmatpush1.bf16.msra.mxu0 %v798
        %939 = vmatprep.subr.bf16.mxu0 %v801
        %940 = vmatpush1.bf16.msra.mxu0 %v800
        %941 = vmatprep.subr.bf16.mxu0 %v803
        %942 = vmatpush1.bf16.msra.mxu0 %v802
        %943 = vmatprep.subr.bf16.mxu0 %v805
        %944 = vmatpush1.bf16.msra.mxu0 %v804
        %945 = vmatprep.subr.bf16.mxu0 %v807
        %946 = vmatpush1.bf16.msra.mxu0 %v806
        %947 = vmatprep.mubr.bf16.mxu0 %v475
        %948 = vmatmul.mubr.bf16.gmra.mrb[0].mxu0 %v474
        %v949 = vpop.f32.mrb[0].mxu0
        %v950 = vadd.f32 %v907, %v949
        %v951 = vpop.f32.mrb[0].mxu0
        %v952 = vadd.f32 %v909, %v951
        %v953 = vpop.f32.mrb[0].mxu0
        %v954 = vadd.f32 %v911, %v953
        %v955 = vpop.f32.mrb[0].mxu0
        %v956 = vadd.f32 %v913, %v955
        %957 = vdwg.mxu0
        %v958 = vmax.f32 %v950, 0.0
        %v959 = vmax.f32 %v952, 0.0
        %v960 = vmax.f32 %v954, 0.0
        %v961 = vmax.f32 %v956, 0.0
        %v962 = vpack.c.bf16 %v960, %v958
        %v963 = vpack.c.bf16 %v961, %v959
        %v964 = vld [vmem:[%s5] sm:$0xf]
        %v965 = vld [vmem:[%s5 + $0x4] sm:$0xf]
        %v966 = vld [vmem:[%s5 + $0x8] sm:$0xf]
        %v967 = vld [vmem:[%s5 + $0xc] sm:$0xf]
        %v968 = vld [vmem:[%s5 + $0x10] sm:$0xf]
        %v969 = vld [vmem:[%s5 + $0x14] sm:$0xf]
        %v970 = vld [vmem:[%s5 + $0x18] sm:$0xf]
        %v971 = vld [vmem:[%s5 + $0x1c] sm:$0xf]
        %v972 = vld [vmem:[%s5 + $0x20] sm:$0xf]
        %v973 = vld [vmem:[%s5 + $0x24] sm:$0xf]
        %v974 = vld [vmem:[%s5 + $0x28] sm:$0xf]
        %v975 = vld [vmem:[%s5 + $0x2c] sm:$0xf]
        %v976 = vld [vmem:[%s5 + $0x30] sm:$0xf]
        %v977 = vld [vmem:[%s5 + $0x34] sm:$0xf]
        %v978 = vld [vmem:[%s5 + $0x38] sm:$0xf]
        %v979 = vld [vmem:[%s5 + $0x3c] sm:$0xf]
        %v980 = vld [vmem:[%s5 + $0x40] sm:$0xf]
        %v981 = vld [vmem:[%s5 + $0x44] sm:$0xf]
        %v982 = vld [vmem:[%s5 + $0x48] sm:$0xf]
        %v983 = vld [vmem:[%s5 + $0x4c] sm:$0xf]
        %v984 = vld [vmem:[%s5 + $0x50] sm:$0xf]
        %v985 = vld [vmem:[%s5 + $0x54] sm:$0xf]
        %v986 = vld [vmem:[%s5 + $0x58] sm:$0xf]
        %v987 = vld [vmem:[%s5 + $0x5c] sm:$0xf]
        %v988 = vld [vmem:[%s5 + $0x60] sm:$0xf]
        %v989 = vld [vmem:[%s5 + $0x64] sm:$0xf]
        %v990 = vld [vmem:[%s5 + $0x68] sm:$0xf]
        %v991 = vld [vmem:[%s5 + $0x6c] sm:$0xf]
        %v992 = vld [vmem:[%s5 + $0x70] sm:$0xf]
        %v993 = vld [vmem:[%s5 + $0x74] sm:$0xf]
        %v994 = vld [vmem:[%s5 + $0x78] sm:$0xf]
        %v995 = vld [vmem:[%s5 + $0x7c] sm:$0xf]
        %v996 = vld [vmem:[%s6] sm:$0x1]
        %v998 = vlaneseq
        %v999 = vshrl.u32 %v998, 7
        %v1000 = vsub.s32 0, %v999
        %v1001 = vrot.slane %v996, %v1000
        %v1035 = vunpack.c.l.b16 %v964
        %v1036 = vunpack.c.l.b16 %v965
        %v1037 = vunpack.c.l.b16 %v966
        %v1038 = vunpack.c.l.b16 %v967
        %v1039 = vunpack.c.l.b16 %v968
        %v1040 = vunpack.c.l.b16 %v969
        %v1041 = vunpack.c.l.b16 %v970
        %v1042 = vunpack.c.l.b16 %v971
        %v1043 = vunpack.c.l.b16 %v972
        %v1044 = vunpack.c.l.b16 %v973
        %v1045 = vunpack.c.l.b16 %v974
        %v1046 = vunpack.c.l.b16 %v975
        %v1047 = vunpack.c.l.b16 %v976
        %v1048 = vunpack.c.l.b16 %v977
        %v1049 = vunpack.c.l.b16 %v978
        %v1050 = vunpack.c.l.b16 %v979
        %v1051 = vunpack.c.l.b16 %v980
        %v1052 = vunpack.c.l.b16 %v981
        %v1053 = vunpack.c.l.b16 %v982
        %v1054 = vunpack.c.l.b16 %v983
        %v1055 = vunpack.c.l.b16 %v984
        %v1056 = vunpack.c.l.b16 %v985
        %v1057 = vunpack.c.l.b16 %v986
        %v1058 = vunpack.c.l.b16 %v987
        %v1059 = vunpack.c.l.b16 %v988
        %v1060 = vunpack.c.l.b16 %v989
        %v1061 = vunpack.c.l.b16 %v990
        %v1062 = vunpack.c.l.b16 %v991
        %v1063 = vunpack.c.l.b16 %v992
        %v1064 = vunpack.c.l.b16 %v993
        %v1065 = vunpack.c.l.b16 %v994
        %v1066 = vunpack.c.l.b16 %v995
        %v1067 = vpack.c.b16 %v1036, %v1035
        %v1068 = vpack.c.b16 %v1038, %v1037
        %v1069 = vpack.c.b16 %v1040, %v1039
        %v1070 = vpack.c.b16 %v1042, %v1041
        %v1071 = vpack.c.b16 %v1044, %v1043
        %v1072 = vpack.c.b16 %v1046, %v1045
        %v1073 = vpack.c.b16 %v1048, %v1047
        %v1074 = vpack.c.b16 %v1050, %v1049
        %v1075 = vpack.c.b16 %v1052, %v1051
        %v1076 = vpack.c.b16 %v1054, %v1053
        %v1077 = vpack.c.b16 %v1056, %v1055
        %v1078 = vpack.c.b16 %v1058, %v1057
        %v1079 = vpack.c.b16 %v1060, %v1059
        %v1080 = vpack.c.b16 %v1062, %v1061
        %v1081 = vpack.c.b16 %v1064, %v1063
        %v1082 = vpack.c.b16 %v1066, %v1065
        %1099 = vmatprep.subr.bf16.mxu0 0
        %1100 = vmatpush1.bf16.msra.mxu0 %v1067
        %1101 = vmatprep.subr.bf16.mxu0 0
        %1102 = vmatpush1.bf16.msra.mxu0 %v1068
        %1103 = vmatprep.subr.bf16.mxu0 0
        %1104 = vmatpush1.bf16.msra.mxu0 %v1069
        %1105 = vmatprep.subr.bf16.mxu0 0
        %1106 = vmatpush1.bf16.msra.mxu0 %v1070
        %1107 = vmatprep.subr.bf16.mxu0 0
        %1108 = vmatpush1.bf16.msra.mxu0 %v1071
        %1109 = vmatprep.subr.bf16.mxu0 0
        %1110 = vmatpush1.bf16.msra.mxu0 %v1072
        %1111 = vmatprep.subr.bf16.mxu0 0
        %1112 = vmatpush1.bf16.msra.mxu0 %v1073
        %1113 = vmatprep.subr.bf16.mxu0 0
        %1114 = vmatpush1.bf16.msra.mxu0 %v1074
        %1115 = vmatprep.subr.bf16.mxu0 0
        %1116 = vmatpush1.bf16.msra.mxu0 %v1075
        %1117 = vmatprep.subr.bf16.mxu0 0
        %1118 = vmatpush1.bf16.msra.mxu0 %v1076
        %1119 = vmatprep.subr.bf16.mxu0 0
        %1120 = vmatpush1.bf16.msra.mxu0 %v1077
        %1121 = vmatprep.subr.bf16.mxu0 0
        %1122 = vmatpush1.bf16.msra.mxu0 %v1078
        %1123 = vmatprep.subr.bf16.mxu0 0
        %1124 = vmatpush1.bf16.msra.mxu0 %v1079
        %1125 = vmatprep.subr.bf16.mxu0 0
        %1126 = vmatpush1.bf16.msra.mxu0 %v1080
        %1127 = vmatprep.subr.bf16.mxu0 0
        %1128 = vmatpush1.bf16.msra.mxu0 %v1081
        %1129 = vmatprep.subr.bf16.mxu0 0
        %1130 = vmatpush1.bf16.msra.mxu0 %v1082
        %1131 = vmatprep.mubr.bf16.mxu0 %v963
        %1132 = vmatmul.mubr.bf16.gmra.mrb[0].mxu0 %v962
        %v1133 = vpop.f32.mrb[0].mxu0
        %v1134 = vadd.f32 %v1001, %v1133
        %v1135 = vpop.f32.mrb[0].mxu0
        %v1136 = vpop.f32.mrb[0].mxu0
        %v1137 = vadd.f32 %v1001, %v1136
        %v1138 = vpop.f32.mrb[0].mxu0
        %1139 = vdwg.mxu0
        %v1140 = vpack.c.bf16 %v1137, %v1134
        %v1142 = vunpack.c.l.b16 %v1140
        %v1143 = vunpack.c.h.b16 %v1140
        %v1144 = vpack.c.b16 %v1142, %v1142
        %v1145 = vpack.c.b16 %v1143, %v1143
        %1148 = vst [vmem:[%s280] sm:$0xf] %v1144
        %1149 = vst [vmem:[%s280 + $0x4] sm:$0xf] %v1145
        %s1150 = sand.u32 %s178, 1
        %s1151 = sand.u32 %s178, 1
        %s1152 = smul.addr %s1151, 8
        %s1153 = scalar_lea.vmem [#allocation2], %s1152
        // Predicated region
        $region49: #{pair_classifier_forward.1} parent=47 // pred_check
          %p1154 = pneg %p188
        $region50: #{pair_classifier_forward.1} parent=47 // pred_check_branch
          %1156 = sbr.rel (%p1154) target = $region52
        $region51: #{pair_classifier_forward.1} parent=47 // pred_region
          %s1157 = smul.u32 2, %s18
          %s1158 = ssub.s32 3, %s1157
          %p1159 = scmp.lt.s32.totalorder %s1158, 2
          %s1160 = scalar_select %p1159, %s1158, 2
          %s1161 = smul.u32 64, %s1160
          %p1162 = scmp.ne.s32.totalorder 0, %s1161
          %s1163 = smul.addr %s1157, 4
          %s1164 = scalar_lea.vmem %s7, %s1163
          // Predicated region
          $region53: #{pair_classifier_forward.1} parent=51 // pred_check
            %p1165 = pneg %p1162
          $region54: #{pair_classifier_forward.1} parent=51 // pred_check_branch
            %1167 = sbr.rel (%p1165) target = $region56
          $region55: #{pair_classifier_forward.1} parent=51 // pred_region
            // Predicated region
            $region57: #{pair_classifier_forward.1} parent=55 // pred_check
              _
            $region58: #{pair_classifier_forward.1} parent=55 // pred_check_branch
              %1169 = sbr.rel target = $region60
            $region59: #{pair_classifier_forward.1} parent=55 // pred_region
              // Predicated region
              $region79: #{pair_classifier_forward.1} parent=59 // pred_check
                _
              $region80: #{pair_classifier_forward.1} parent=59 // pred_check_branch
                %1220 = sbr.rel (0) target = $region82
              $region81: #{pair_classifier_forward.1} parent=59 // pred_region
                %s1222 = sshrl.u32 %s1160, 1
                // While loop
                $region83: #{pair_classifier_forward.1} parent=81 // loop_pre_header
                  _
                $region84: #{pair_classifier_forward.1} parent=81 // loop_header
                  %s1224 = sphi 0, %s1226
                  %p1225 = scmp.ge.s32.totalorder %s1224, %s1222
                  %s1229 = sphi 0, %s1238
                  %s1230 = sphi %s1153, %s1241
                  %s1231 = sphi %s1164, %s1242
                $region85: #{pair_classifier_forward.1} parent=81 // loop_header_branch
                  %1228 = sbr.rel (%p1225) target = $region89
                $region86: #{pair_classifier_forward.1} parent=81 // loop_body
                  %v1232 = vld [vmem:[%s1230] sm:$0xf]
                  %1233 = vst [vmem:[%s1231] sm:$0xf] %v1232
                  %v1234 = vld [vmem:[%s1230 + $0x4] sm:$0xf]
                  %1235 = vst [vmem:[%s1231 + $0x4] sm:$0xf] %v1234
                  %s1236 = sadd.s32 1, %s1229
                  %p1237 = scmp.ge.s32.totalorder %s1236, %s1222
                  %s1238 = scalar_select %p1237, 0, %s1236
                  %s1239 = smul.u32 %s1238, 8
                  %s1240 = smul.u32 %s1238, 8
                  %s1241 = scalar_lea.vmem %s1153, %s1239 [#allocation2]
                  %s1242 = scalar_lea.vmem %s1164, %s1240
                $region87: #{pair_classifier_forward.1} parent=81 // loop_footer
                  %s1226 = sadd.s32 %s1224, 1
                $region88: #{pair_classifier_forward.1} parent=81 // loop_footer_branch
                  %1223 = sbr.rel target = $region84
                $region89: #{pair_classifier_forward.1} parent=81 // loop_exit
                  _
                %s1243 = sshrl.u32 %s1160, 1
                %s1244 = sand.u32 %s1160, 1
                %s1245 = smul.u32 %s1243, 2
                %s1246 = smul.u32 4, %s1245
                %s1247 = scalar_lea.vmem %s1153, %s1246 [#allocation2]
                %s1248 = smul.u32 4, %s1245
                %s1249 = scalar_lea.vmem %s1164, %s1248
                // While loop
                $region90: #{pair_classifier_forward.1} parent=81 // loop_pre_header
                  _
                $region91: #{pair_classifier_forward.1} parent=81 // loop_header
                  %s1251 = sphi 0, %s1253
                  %p1252 = scmp.ge.s32.totalorder %s1251, %s1244
                  %s1256 = sphi 0, %s1263
                  %s1257 = sphi %s1247, %s1266
                  %s1258 = sphi %s1249, %s1267
                $region92: #{pair_classifier_forward.1} parent=81 // loop_header_branch
                  %1255 = sbr.rel (%p1252) target = $region96
                $region93: #{pair_classifier_forward.1} parent=81 // loop_body
                  %v1259 = vld [vmem:[%s1257] sm:$0xf]
                  %1260 = vst [vmem:[%s1258] sm:$0xf] %v1259
                  %s1261 = sadd.s32 1, %s1256
                  %p1262 = scmp.ge.s32.totalorder %s1261, %s1244
                  %s1263 = scalar_select %p1262, 0, %s1261
                  %s1264 = smul.u32 %s1263, 4
                  %s1265 = smul.u32 %s1263, 4
                  %s1266 = scalar_lea.vmem %s1247, %s1264 [#allocation2]
                  %s1267 = scalar_lea.vmem %s1249, %s1265
                $region94: #{pair_classifier_forward.1} parent=81 // loop_footer
                  %s1253 = sadd.s32 %s1251, 1
                $region95: #{pair_classifier_forward.1} parent=81 // loop_footer_branch
                  %1250 = sbr.rel target = $region91
                $region96: #{pair_classifier_forward.1} parent=81 // loop_exit
                  _
              $region82: #{pair_classifier_forward.1} parent=59 // pred_fallthru
                _
            $region60: #{pair_classifier_forward.1} parent=55 // pred_fallthru
              _
            // Predicated region
            $region61: #{pair_classifier_forward.1} parent=55 // pred_check
              _
            $region62: #{pair_classifier_forward.1} parent=55 // pred_check_branch
              %1171 = sbr.rel (0) target = $region64
            $region63: #{pair_classifier_forward.1} parent=55 // pred_region
              %s1173 = sshrl.u32 %s1160, 1
              // While loop
              $region65: #{pair_classifier_forward.1} parent=63 // loop_pre_header
                _
              $region66: #{pair_classifier_forward.1} parent=63 // loop_header
                %s1175 = sphi 0, %s1177
                %p1176 = scmp.ge.s32.totalorder %s1175, %s1173
                %s1180 = sphi 0, %s1189
                %s1181 = sphi %s1153, %s1192
                %s1182 = sphi %s1164, %s1193
              $region67: #{pair_classifier_forward.1} parent=63 // loop_header_branch
                %1179 = sbr.rel (%p1176) target = $region71
              $region68: #{pair_classifier_forward.1} parent=63 // loop_body
                %v1183 = vld [vmem:[%s1181] sm:$0xf]
                %1184 = vst [vmem:[%s1182] sm:$0xf] %v1183
                %v1185 = vld [vmem:[%s1181 + $0x4] sm:$0xf]
                %1186 = vst [vmem:[%s1182 + $0x4] sm:$0xf] %v1185
                %s1187 = sadd.s32 1, %s1180
                %p1188 = scmp.ge.s32.totalorder %s1187, %s1173
                %s1189 = scalar_select %p1188, 0, %s1187
                %s1190 = smul.u32 %s1189, 8
                %s1191 = smul.u32 %s1189, 8
                %s1192 = scalar_lea.vmem %s1153, %s1190 [#allocation2]
                %s1193 = scalar_lea.vmem %s1164, %s1191
              $region69: #{pair_classifier_forward.1} parent=63 // loop_footer
                %s1177 = sadd.s32 %s1175, 1
              $region70: #{pair_classifier_forward.1} parent=63 // loop_footer_branch
                %1174 = sbr.rel target = $region66
              $region71: #{pair_classifier_forward.1} parent=63 // loop_exit
                _
              %s1194 = sshrl.u32 %s1160, 1
              %s1195 = sand.u32 %s1160, 1
              %s1196 = smul.u32 %s1194, 2
              %s1197 = smul.u32 4, %s1196
              %s1198 = scalar_lea.vmem %s1153, %s1197 [#allocation2]
              %s1199 = smul.u32 4, %s1196
              %s1200 = scalar_lea.vmem %s1164, %s1199
              // While loop
              $region72: #{pair_classifier_forward.1} parent=63 // loop_pre_header
                _
              $region73: #{pair_classifier_forward.1} parent=63 // loop_header
                %s1202 = sphi 0, %s1204
                %p1203 = scmp.ge.s32.totalorder %s1202, %s1195
                %s1207 = sphi 0, %s1214
                %s1208 = sphi %s1198, %s1217
                %s1209 = sphi %s1200, %s1218
              $region74: #{pair_classifier_forward.1} parent=63 // loop_header_branch
                %1206 = sbr.rel (%p1203) target = $region78
              $region75: #{pair_classifier_forward.1} parent=63 // loop_body
                %v1210 = vld [vmem:[%s1208] sm:$0xf]
                %1211 = vst [vmem:[%s1209] sm:$0xf] %v1210
                %s1212 = sadd.s32 1, %s1207
                %p1213 = scmp.ge.s32.totalorder %s1212, %s1195
                %s1214 = scalar_select %p1213, 0, %s1212
                %s1215 = smul.u32 %s1214, 4
                %s1216 = smul.u32 %s1214, 4
                %s1217 = scalar_lea.vmem %s1198, %s1215 [#allocation2]
                %s1218 = scalar_lea.vmem %s1200, %s1216
              $region76: #{pair_classifier_forward.1} parent=63 // loop_footer
                %s1204 = sadd.s32 %s1202, 1
              $region77: #{pair_classifier_forward.1} parent=63 // loop_footer_branch
                %1201 = sbr.rel target = $region73
              $region78: #{pair_classifier_forward.1} parent=63 // loop_exit
                _
            $region64: #{pair_classifier_forward.1} parent=55 // pred_fallthru
              _
          $region56: #{pair_classifier_forward.1} parent=51 // pred_fallthru
            _
          %1268 = vnop
        $region52: #{pair_classifier_forward.1} parent=47 // pred_fallthru
          _
      $region48: #{pair_classifier_forward.1} parent=5 // pred_fallthru
        _
      %p1269 = scmp.le.s32.totalorder 2, %s13
      // Predicated region
      $region97: #{pair_classifier_forward.1} parent=5 // pred_check
        %p1270 = pneg %p1269
      $region98: #{pair_classifier_forward.1} parent=5 // pred_check_branch
        %1272 = sbr.rel (%p1270) target = $region100
      $region99: #{pair_classifier_forward.1} parent=5 // pred_region
        %s1273 = ssub.s32 %s13, 2
        // Predicated region
        $region101: #{pair_classifier_forward.1} parent=99 // pred_check
          %p1274 = pneg %p194
        $region102: #{pair_classifier_forward.1} parent=99 // pred_check_branch
          %1276 = sbr.rel (%p1274) target = $region104
        $region103: #{pair_classifier_forward.1} parent=99 // pred_region
          %s1277 = sand.u32 %s179, 1
          %s1278 = sand.u32 %s179, 1
          %s1279 = smul.addr %s1278, 8
          %s1280 = scalar_lea.vmem [#allocation2], %s1279
        $region104: #{pair_classifier_forward.1} parent=99 // pred_fallthru
          _
      $region100: #{pair_classifier_forward.1} parent=5 // pred_fallthru
        _
    $region6: #{pair_classifier_forward.1} parent=1 // loop_footer
      %s17 = sadd.s32 1, %s13
    $region7: #{pair_classifier_forward.1} parent=1 // loop_footer_branch
      %12 = sbr.rel target = $region3
    $region8: #{pair_classifier_forward.1} parent=1 // loop_exit
      _

</llo_original>
